<compile_context>
chip_gen: v5e
topology: v5e:2x2
jax: 0.10.0
libtpu: 0.0.40
codegen_flags: <defaults>
</compile_context>

<pallas_src>
import jax
import jax.numpy as jnp
from jax.experimental import pallas as pl
from jax.experimental.pallas import tpu as pltpu


def _round_up(x, m):
    return (x + m - 1) // m * m


def embed_gather_kernel(ids_ref, tbl_ref, out_ref, sem_ref):
    """ids_ref: (N_pad,) int32 in SMEM (scalar prefetch);
    tbl_ref: (V, H) embedding table left in HBM (pl.ANY);
    out_ref: (tile, H) pipelined VMEM output block;
    sem_ref: (1,) DMA semaphore."""
    tile = out_ref.shape[0]
    base = pl.program_id(0) * tile
    sem = sem_ref.at[0]

    # Issue all row gathers for this tile: HBM table row ids[base+t] ->
    # row t of the output block.  All copies share one counting semaphore,
    # so every row DMA of the tile can be in flight concurrently.
    for t in range(tile):
        row = ids_ref[base + t]          # scalar SMEM read, before any wait
        pltpu.make_async_copy(
            tbl_ref.at[pl.ds(row, 1), :],
            out_ref.at[pl.ds(t, 1), :],
            sem,
        ).start()

    # Drain: one wait per issued row copy (all copies have identical size,
    # so only the semaphore and the copy shape matter here).
    for t in range(tile):
        pltpu.make_async_copy(
            tbl_ref.at[pl.ds(0, 1), :],
            out_ref.at[pl.ds(t, 1), :],
            sem,
        ).wait()


def embed_lookup(input_ids, table, *, token_tile=128):
    """input_ids: (B, S) int; table: (V, H) -> (B, S, H) in table dtype."""
    B, S = input_ids.shape
    V, H = table.shape
    N = B * S

    # Token tile: multiple of 8, clamped to the (padded) token count so the
    # toy config does not gather useless pad rows.
    tile = min(int(token_tile), _round_up(N, 8))
    tile = max(8, _round_up(tile, 8))
    n_pad = _round_up(N, tile)

    ids = input_ids.reshape(-1).astype(jnp.int32)
    if n_pad != N:
        ids = jnp.pad(ids, (0, n_pad - N))          # pad with id 0 (in range)

    itemsize = jnp.dtype(table.dtype).itemsize
    cost = pl.CostEstimate(
        flops=0,
        transcendentals=0,
        bytes_accessed=int(2 * n_pad * H * itemsize + n_pad * 4),
    )

    out = pl.pallas_call(
        embed_gather_kernel,
        out_shape=jax.ShapeDtypeStruct((n_pad, H), table.dtype),
        grid_spec=pltpu.PrefetchScalarGridSpec(
            num_scalar_prefetch=1,                           # ids -> SMEM
            grid=(n_pad // tile,),
            in_specs=[pl.BlockSpec(memory_space=pl.ANY)],    # table stays in HBM
            out_specs=pl.BlockSpec((tile, H), lambda i, ids: (i, 0)),
            scratch_shapes=[pltpu.SemaphoreType.DMA((1,))],
        ),
        compiler_params=pltpu.CompilerParams(
            dimension_semantics=("parallel",)),
        cost_estimate=cost,
    )(ids, table)

    return out[:N].reshape(B, S, H)


def init_embedding_table(key, vocab_size, hidden_size, padding_idx):
    # Deterministic synthetic weights (stand-in for load_weights()); the
    # padding_idx row is zero, as nn.Embedding(padding_idx=...) initializes it.
    w = jax.random.normal(key, (vocab_size, hidden_size), jnp.float32) * 0.02
    w = w.at[padding_idx].set(0.0)
    return w


if __name__ == "__main__":
    # Small synthetic Phi3Config-like sizes
    vocab_size = 128
    hidden_size = 128
    pad_token_id = 0
    batch, seq = 2, 8

    key = jax.random.PRNGKey(0)
    k_w, k_ids = jax.random.split(key)

    table = init_embedding_table(k_w, vocab_size, hidden_size, pad_token_id)
    input_ids = jax.random.randint(k_ids, (batch, seq), 0, vocab_size,
                                   dtype=jnp.int32)

    out = embed_lookup(input_ids, table)
    out = jax.block_until_ready(out)

    # sanity check against plain-JAX reference gather
    ref = jnp.take(table, input_ids.reshape(-1), axis=0).reshape(
        batch, seq, hidden_size)
    assert out.shape == (batch, seq, hidden_size)
    assert jnp.allclose(out, ref, atol=1e-6), "mismatch vs reference gather"

    # TODO(synk): load_weights() (safetensors checkpoint read) replaced by
    #             in-script deterministic init; embed_dropout exists in
    #             __init__ but is unused in forward -> no-op here.
    print("KERNEL_OK")
</pallas_src>

<mosaic_0001>
module attributes {stable_mosaic.version = 11 : i64} {
  func.func @embed_gather_kernel(%arg0: i32, %arg1: memref<16xi32, #tpu.memory_space<smem>>, %arg2: memref<128x128xf32, #tpu.memory_space<any>>, %arg3: memref<16x128xf32, #tpu.memory_space<vmem>>, %arg4: memref<1x!tpu.dma_semaphore, #tpu.memory_space<semaphore_mem>>) attributes {dimension_semantics = [#tpu.dimension_semantics<parallel>], iteration_bounds = array<i64: 1>, scalar_prefetch = 1 : i64, scratch_operands = 1 : i64, tpu.core_type = #tpu.core_type<tc>, window_params = [{}, {transform_indices = @transform_1, window_bounds = array<i64: 16, 128>}]} {
    %c16_i32 = arith.constant 16 : i32
    %0 = arith.muli %arg0, %c16_i32 : i32
    %c0_i32 = arith.constant 0 : i32
    %1 = arith.addi %0, %c0_i32 : i32
    %2 = arith.index_cast %1 : i32 to index
    %3 = memref.load %arg1[%2] : memref<16xi32, #tpu.memory_space<smem>>
    %c0_i32_0 = arith.constant 0 : i32
    %c0_i32_1 = arith.constant 0 : i32
    %4 = tpu.memref_slice %arg2[%3, %c0_i32_1] : memref<128x128xf32, #tpu.memory_space<any>> -> memref<1x128xf32, #tpu.memory_space<any>>
    %c0_i32_2 = arith.constant 0 : i32
    %c0_i32_3 = arith.constant 0 : i32
    %5 = tpu.memref_slice %arg3[%c0_i32_2, %c0_i32_3] : memref<16x128xf32, #tpu.memory_space<vmem>> -> memref<1x128xf32, #tpu.memory_space<vmem>>
    %6 = tpu.memref_slice %arg4[%c0_i32_0] : memref<1x!tpu.dma_semaphore, #tpu.memory_space<semaphore_mem>> -> memref<1x!tpu.dma_semaphore, #tpu.memory_space<semaphore_mem>>
    %7 = tpu.memref_squeeze %6 : memref<1x!tpu.dma_semaphore, #tpu.memory_space<semaphore_mem>> -> memref<!tpu.dma_semaphore, #tpu.memory_space<semaphore_mem>>
    tpu.enqueue_dma source(%4 : memref<1x128xf32, #tpu.memory_space<any>>) target(%5 : memref<1x128xf32, #tpu.memory_space<vmem>>) target_semaphore(%7 : memref<!tpu.dma_semaphore, #tpu.memory_space<semaphore_mem>>)
    %c1_i32 = arith.constant 1 : i32
    %8 = arith.addi %0, %c1_i32 : i32
    %9 = arith.index_cast %8 : i32 to index
    %10 = memref.load %arg1[%9] : memref<16xi32, #tpu.memory_space<smem>>
    %c0_i32_4 = arith.constant 0 : i32
    %c0_i32_5 = arith.constant 0 : i32
    %11 = tpu.memref_slice %arg2[%10, %c0_i32_5] : memref<128x128xf32, #tpu.memory_space<any>> -> memref<1x128xf32, #tpu.memory_space<any>>
    %c1_i32_6 = arith.constant 1 : i32
    %c0_i32_7 = arith.constant 0 : i32
    %12 = tpu.memref_slice %arg3[%c1_i32_6, %c0_i32_7] : memref<16x128xf32, #tpu.memory_space<vmem>> -> memref<1x128xf32, #tpu.memory_space<vmem>>
    %13 = tpu.memref_slice %arg4[%c0_i32_4] : memref<1x!tpu.dma_semaphore, #tpu.memory_space<semaphore_mem>> -> memref<1x!tpu.dma_semaphore, #tpu.memory_space<semaphore_mem>>
    %14 = tpu.memref_squeeze %13 : memref<1x!tpu.dma_semaphore, #tpu.memory_space<semaphore_mem>> -> memref<!tpu.dma_semaphore, #tpu.memory_space<semaphore_mem>>
    tpu.enqueue_dma source(%11 : memref<1x128xf32, #tpu.memory_space<any>>) target(%12 : memref<1x128xf32, #tpu.memory_space<vmem>>) target_semaphore(%14 : memref<!tpu.dma_semaphore, #tpu.memory_space<semaphore_mem>>)
    %c2_i32 = arith.constant 2 : i32
    %15 = arith.addi %0, %c2_i32 : i32
    %16 = arith.index_cast %15 : i32 to index
    %17 = memref.load %arg1[%16] : memref<16xi32, #tpu.memory_space<smem>>
    %c0_i32_8 = arith.constant 0 : i32
    %c0_i32_9 = arith.constant 0 : i32
    %18 = tpu.memref_slice %arg2[%17, %c0_i32_9] : memref<128x128xf32, #tpu.memory_space<any>> -> memref<1x128xf32, #tpu.memory_space<any>>
    %c2_i32_10 = arith.constant 2 : i32
    %c0_i32_11 = arith.constant 0 : i32
    %19 = tpu.memref_slice %arg3[%c2_i32_10, %c0_i32_11] : memref<16x128xf32, #tpu.memory_space<vmem>> -> memref<1x128xf32, #tpu.memory_space<vmem>>
    %20 = tpu.memref_slice %arg4[%c0_i32_8] : memref<1x!tpu.dma_semaphore, #tpu.memory_space<semaphore_mem>> -> memref<1x!tpu.dma_semaphore, #tpu.memory_space<semaphore_mem>>
    %21 = tpu.memref_squeeze %20 : memref<1x!tpu.dma_semaphore, #tpu.memory_space<semaphore_mem>> -> memref<!tpu.dma_semaphore, #tpu.memory_space<semaphore_mem>>
    tpu.enqueue_dma source(%18 : memref<1x128xf32, #tpu.memory_space<any>>) target(%19 : memref<1x128xf32, #tpu.memory_space<vmem>>) target_semaphore(%21 : memref<!tpu.dma_semaphore, #tpu.memory_space<semaphore_mem>>)
    %c3_i32 = arith.constant 3 : i32
    %22 = arith.addi %0, %c3_i32 : i32
    %23 = arith.index_cast %22 : i32 to index
    %24 = memref.load %arg1[%23] : memref<16xi32, #tpu.memory_space<smem>>
    %c0_i32_12 = arith.constant 0 : i32
    %c0_i32_13 = arith.constant 0 : i32
    %25 = tpu.memref_slice %arg2[%24, %c0_i32_13] : memref<128x128xf32, #tpu.memory_space<any>> -> memref<1x128xf32, #tpu.memory_space<any>>
    %c3_i32_14 = arith.constant 3 : i32
    %c0_i32_15 = arith.constant 0 : i32
    %26 = tpu.memref_slice %arg3[%c3_i32_14, %c0_i32_15] : memref<16x128xf32, #tpu.memory_space<vmem>> -> memref<1x128xf32, #tpu.memory_space<vmem>>
    %27 = tpu.memref_slice %arg4[%c0_i32_12] : memref<1x!tpu.dma_semaphore, #tpu.memory_space<semaphore_mem>> -> memref<1x!tpu.dma_semaphore, #tpu.memory_space<semaphore_mem>>
    %28 = tpu.memref_squeeze %27 : memref<1x!tpu.dma_semaphore, #tpu.memory_space<semaphore_mem>> -> memref<!tpu.dma_semaphore, #tpu.memory_space<semaphore_mem>>
    tpu.enqueue_dma source(%25 : memref<1x128xf32, #tpu.memory_space<any>>) target(%26 : memref<1x128xf32, #tpu.memory_space<vmem>>) target_semaphore(%28 : memref<!tpu.dma_semaphore, #tpu.memory_space<semaphore_mem>>)
    %c4_i32 = arith.constant 4 : i32
    %29 = arith.addi %0, %c4_i32 : i32
    %30 = arith.index_cast %29 : i32 to index
    %31 = memref.load %arg1[%30] : memref<16xi32, #tpu.memory_space<smem>>
    %c0_i32_16 = arith.constant 0 : i32
    %c0_i32_17 = arith.constant 0 : i32
    %32 = tpu.memref_slice %arg2[%31, %c0_i32_17] : memref<128x128xf32, #tpu.memory_space<any>> -> memref<1x128xf32, #tpu.memory_space<any>>
    %c4_i32_18 = arith.constant 4 : i32
    %c0_i32_19 = arith.constant 0 : i32
    %33 = tpu.memref_slice %arg3[%c4_i32_18, %c0_i32_19] : memref<16x128xf32, #tpu.memory_space<vmem>> -> memref<1x128xf32, #tpu.memory_space<vmem>>
    %34 = tpu.memref_slice %arg4[%c0_i32_16] : memref<1x!tpu.dma_semaphore, #tpu.memory_space<semaphore_mem>> -> memref<1x!tpu.dma_semaphore, #tpu.memory_space<semaphore_mem>>
    %35 = tpu.memref_squeeze %34 : memref<1x!tpu.dma_semaphore, #tpu.memory_space<semaphore_mem>> -> memref<!tpu.dma_semaphore, #tpu.memory_space<semaphore_mem>>
    tpu.enqueue_dma source(%32 : memref<1x128xf32, #tpu.memory_space<any>>) target(%33 : memref<1x128xf32, #tpu.memory_space<vmem>>) target_semaphore(%35 : memref<!tpu.dma_semaphore, #tpu.memory_space<semaphore_mem>>)
    %c5_i32 = arith.constant 5 : i32
    %36 = arith.addi %0, %c5_i32 : i32
    %37 = arith.index_cast %36 : i32 to index
    %38 = memref.load %arg1[%37] : memref<16xi32, #tpu.memory_space<smem>>
    %c0_i32_20 = arith.constant 0 : i32
    %c0_i32_21 = arith.constant 0 : i32
    %39 = tpu.memref_slice %arg2[%38, %c0_i32_21] : memref<128x128xf32, #tpu.memory_space<any>> -> memref<1x128xf32, #tpu.memory_space<any>>
    %c5_i32_22 = arith.constant 5 : i32
    %c0_i32_23 = arith.constant 0 : i32
    %40 = tpu.memref_slice %arg3[%c5_i32_22, %c0_i32_23] : memref<16x128xf32, #tpu.memory_space<vmem>> -> memref<1x128xf32, #tpu.memory_space<vmem>>
    %41 = tpu.memref_slice %arg4[%c0_i32_20] : memref<1x!tpu.dma_semaphore, #tpu.memory_space<semaphore_mem>> -> memref<1x!tpu.dma_semaphore, #tpu.memory_space<semaphore_mem>>
    %42 = tpu.memref_squeeze %41 : memref<1x!tpu.dma_semaphore, #tpu.memory_space<semaphore_mem>> -> memref<!tpu.dma_semaphore, #tpu.memory_space<semaphore_mem>>
    tpu.enqueue_dma source(%39 : memref<1x128xf32, #tpu.memory_space<any>>) target(%40 : memref<1x128xf32, #tpu.memory_space<vmem>>) target_semaphore(%42 : memref<!tpu.dma_semaphore, #tpu.memory_space<semaphore_mem>>)
    %c6_i32 = arith.constant 6 : i32
    %43 = arith.addi %0, %c6_i32 : i32
    %44 = arith.index_cast %43 : i32 to index
    %45 = memref.load %arg1[%44] : memref<16xi32, #tpu.memory_space<smem>>
    %c0_i32_24 = arith.constant 0 : i32
    %c0_i32_25 = arith.constant 0 : i32
    %46 = tpu.memref_slice %arg2[%45, %c0_i32_25] : memref<128x128xf32, #tpu.memory_space<any>> -> memref<1x128xf32, #tpu.memory_space<any>>
    %c6_i32_26 = arith.constant 6 : i32
    %c0_i32_27 = arith.constant 0 : i32
    %47 = tpu.memref_slice %arg3[%c6_i32_26, %c0_i32_27] : memref<16x128xf32, #tpu.memory_space<vmem>> -> memref<1x128xf32, #tpu.memory_space<vmem>>
    %48 = tpu.memref_slice %arg4[%c0_i32_24] : memref<1x!tpu.dma_semaphore, #tpu.memory_space<semaphore_mem>> -> memref<1x!tpu.dma_semaphore, #tpu.memory_space<semaphore_mem>>
    %49 = tpu.memref_squeeze %48 : memref<1x!tpu.dma_semaphore, #tpu.memory_space<semaphore_mem>> -> memref<!tpu.dma_semaphore, #tpu.memory_space<semaphore_mem>>
    tpu.enqueue_dma source(%46 : memref<1x128xf32, #tpu.memory_space<any>>) target(%47 : memref<1x128xf32, #tpu.memory_space<vmem>>) target_semaphore(%49 : memref<!tpu.dma_semaphore, #tpu.memory_space<semaphore_mem>>)
    %c7_i32 = arith.constant 7 : i32
    %50 = arith.addi %0, %c7_i32 : i32
    %51 = arith.index_cast %50 : i32 to index
    %52 = memref.load %arg1[%51] : memref<16xi32, #tpu.memory_space<smem>>
    %c0_i32_28 = arith.constant 0 : i32
    %c0_i32_29 = arith.constant 0 : i32
    %53 = tpu.memref_slice %arg2[%52, %c0_i32_29] : memref<128x128xf32, #tpu.memory_space<any>> -> memref<1x128xf32, #tpu.memory_space<any>>
    %c7_i32_30 = arith.constant 7 : i32
    %c0_i32_31 = arith.constant 0 : i32
    %54 = tpu.memref_slice %arg3[%c7_i32_30, %c0_i32_31] : memref<16x128xf32, #tpu.memory_space<vmem>> -> memref<1x128xf32, #tpu.memory_space<vmem>>
    %55 = tpu.memref_slice %arg4[%c0_i32_28] : memref<1x!tpu.dma_semaphore, #tpu.memory_space<semaphore_mem>> -> memref<1x!tpu.dma_semaphore, #tpu.memory_space<semaphore_mem>>
    %56 = tpu.memref_squeeze %55 : memref<1x!tpu.dma_semaphore, #tpu.memory_space<semaphore_mem>> -> memref<!tpu.dma_semaphore, #tpu.memory_space<semaphore_mem>>
    tpu.enqueue_dma source(%53 : memref<1x128xf32, #tpu.memory_space<any>>) target(%54 : memref<1x128xf32, #tpu.memory_space<vmem>>) target_semaphore(%56 : memref<!tpu.dma_semaphore, #tpu.memory_space<semaphore_mem>>)
    %c8_i32 = arith.constant 8 : i32
    %57 = arith.addi %0, %c8_i32 : i32
    %58 = arith.index_cast %57 : i32 to index
    %59 = memref.load %arg1[%58] : memref<16xi32, #tpu.memory_space<smem>>
    %c0_i32_32 = arith.constant 0 : i32
    %c0_i32_33 = arith.constant 0 : i32
    %60 = tpu.memref_slice %arg2[%59, %c0_i32_33] : memref<128x128xf32, #tpu.memory_space<any>> -> memref<1x128xf32, #tpu.memory_space<any>>
    %c8_i32_34 = arith.constant 8 : i32
    %c0_i32_35 = arith.constant 0 : i32
    %61 = tpu.memref_slice %arg3[%c8_i32_34, %c0_i32_35] : memref<16x128xf32, #tpu.memory_space<vmem>> -> memref<1x128xf32, #tpu.memory_space<vmem>>
    %62 = tpu.memref_slice %arg4[%c0_i32_32] : memref<1x!tpu.dma_semaphore, #tpu.memory_space<semaphore_mem>> -> memref<1x!tpu.dma_semaphore, #tpu.memory_space<semaphore_mem>>
    %63 = tpu.memref_squeeze %62 : memref<1x!tpu.dma_semaphore, #tpu.memory_space<semaphore_mem>> -> memref<!tpu.dma_semaphore, #tpu.memory_space<semaphore_mem>>
    tpu.enqueue_dma source(%60 : memref<1x128xf32, #tpu.memory_space<any>>) target(%61 : memref<1x128xf32, #tpu.memory_space<vmem>>) target_semaphore(%63 : memref<!tpu.dma_semaphore, #tpu.memory_space<semaphore_mem>>)
    %c9_i32 = arith.constant 9 : i32
    %64 = arith.addi %0, %c9_i32 : i32
    %65 = arith.index_cast %64 : i32 to index
    %66 = memref.load %arg1[%65] : memref<16xi32, #tpu.memory_space<smem>>
    %c0_i32_36 = arith.constant 0 : i32
    %c0_i32_37 = arith.constant 0 : i32
    %67 = tpu.memref_slice %arg2[%66, %c0_i32_37] : memref<128x128xf32, #tpu.memory_space<any>> -> memref<1x128xf32, #tpu.memory_space<any>>
    %c9_i32_38 = arith.constant 9 : i32
    %c0_i32_39 = arith.constant 0 : i32
    %68 = tpu.memref_slice %arg3[%c9_i32_38, %c0_i32_39] : memref<16x128xf32, #tpu.memory_space<vmem>> -> memref<1x128xf32, #tpu.memory_space<vmem>>
    %69 = tpu.memref_slice %arg4[%c0_i32_36] : memref<1x!tpu.dma_semaphore, #tpu.memory_space<semaphore_mem>> -> memref<1x!tpu.dma_semaphore, #tpu.memory_space<semaphore_mem>>
    %70 = tpu.memref_squeeze %69 : memref<1x!tpu.dma_semaphore, #tpu.memory_space<semaphore_mem>> -> memref<!tpu.dma_semaphore, #tpu.memory_space<semaphore_mem>>
    tpu.enqueue_dma source(%67 : memref<1x128xf32, #tpu.memory_space<any>>) target(%68 : memref<1x128xf32, #tpu.memory_space<vmem>>) target_semaphore(%70 : memref<!tpu.dma_semaphore, #tpu.memory_space<semaphore_mem>>)
    %c10_i32 = arith.constant 10 : i32
    %71 = arith.addi %0, %c10_i32 : i32
    %72 = arith.index_cast %71 : i32 to index
    %73 = memref.load %arg1[%72] : memref<16xi32, #tpu.memory_space<smem>>
    %c0_i32_40 = arith.constant 0 : i32
    %c0_i32_41 = arith.constant 0 : i32
    %74 = tpu.memref_slice %arg2[%73, %c0_i32_41] : memref<128x128xf32, #tpu.memory_space<any>> -> memref<1x128xf32, #tpu.memory_space<any>>
    %c10_i32_42 = arith.constant 10 : i32
    %c0_i32_43 = arith.constant 0 : i32
    %75 = tpu.memref_slice %arg3[%c10_i32_42, %c0_i32_43] : memref<16x128xf32, #tpu.memory_space<vmem>> -> memref<1x128xf32, #tpu.memory_space<vmem>>
    %76 = tpu.memref_slice %arg4[%c0_i32_40] : memref<1x!tpu.dma_semaphore, #tpu.memory_space<semaphore_mem>> -> memref<1x!tpu.dma_semaphore, #tpu.memory_space<semaphore_mem>>
    %77 = tpu.memref_squeeze %76 : memref<1x!tpu.dma_semaphore, #tpu.memory_space<semaphore_mem>> -> memref<!tpu.dma_semaphore, #tpu.memory_space<semaphore_mem>>
    tpu.enqueue_dma source(%74 : memref<1x128xf32, #tpu.memory_space<any>>) target(%75 : memref<1x128xf32, #tpu.memory_space<vmem>>) target_semaphore(%77 : memref<!tpu.dma_semaphore, #tpu.memory_space<semaphore_mem>>)
    %c11_i32 = arith.constant 11 : i32
    %78 = arith.addi %0, %c11_i32 : i32
    %79 = arith.index_cast %78 : i32 to index
    %80 = memref.load %arg1[%79] : memref<16xi32, #tpu.memory_space<smem>>
    %c0_i32_44 = arith.constant 0 : i32
    %c0_i32_45 = arith.constant 0 : i32
    %81 = tpu.memref_slice %arg2[%80, %c0_i32_45] : memref<128x128xf32, #tpu.memory_space<any>> -> memref<1x128xf32, #tpu.memory_space<any>>
    %c11_i32_46 = arith.constant 11 : i32
    %c0_i32_47 = arith.constant 0 : i32
    %82 = tpu.memref_slice %arg3[%c11_i32_46, %c0_i32_47] : memref<16x128xf32, #tpu.memory_space<vmem>> -> memref<1x128xf32, #tpu.memory_space<vmem>>
    %83 = tpu.memref_slice %arg4[%c0_i32_44] : memref<1x!tpu.dma_semaphore, #tpu.memory_space<semaphore_mem>> -> memref<1x!tpu.dma_semaphore, #tpu.memory_space<semaphore_mem>>
    %84 = tpu.memref_squeeze %83 : memref<1x!tpu.dma_semaphore, #tpu.memory_space<semaphore_mem>> -> memref<!tpu.dma_semaphore, #tpu.memory_space<semaphore_mem>>
    tpu.enqueue_dma source(%81 : memref<1x128xf32, #tpu.memory_space<any>>) target(%82 : memref<1x128xf32, #tpu.memory_space<vmem>>) target_semaphore(%84 : memref<!tpu.dma_semaphore, #tpu.memory_space<semaphore_mem>>)
    %c12_i32 = arith.constant 12 : i32
    %85 = arith.addi %0, %c12_i32 : i32
    %86 = arith.index_cast %85 : i32 to index
    %87 = memref.load %arg1[%86] : memref<16xi32, #tpu.memory_space<smem>>
    %c0_i32_48 = arith.constant 0 : i32
    %c0_i32_49 = arith.constant 0 : i32
    %88 = tpu.memref_slice %arg2[%87, %c0_i32_49] : memref<128x128xf32, #tpu.memory_space<any>> -> memref<1x128xf32, #tpu.memory_space<any>>
    %c12_i32_50 = arith.constant 12 : i32
    %c0_i32_51 = arith.constant 0 : i32
    %89 = tpu.memref_slice %arg3[%c12_i32_50, %c0_i32_51] : memref<16x128xf32, #tpu.memory_space<vmem>> -> memref<1x128xf32, #tpu.memory_space<vmem>>
    %90 = tpu.memref_slice %arg4[%c0_i32_48] : memref<1x!tpu.dma_semaphore, #tpu.memory_space<semaphore_mem>> -> memref<1x!tpu.dma_semaphore, #tpu.memory_space<semaphore_mem>>
    %91 = tpu.memref_squeeze %90 : memref<1x!tpu.dma_semaphore, #tpu.memory_space<semaphore_mem>> -> memref<!tpu.dma_semaphore, #tpu.memory_space<semaphore_mem>>
    tpu.enqueue_dma source(%88 : memref<1x128xf32, #tpu.memory_space<any>>) target(%89 : memref<1x128xf32, #tpu.memory_space<vmem>>) target_semaphore(%91 : memref<!tpu.dma_semaphore, #tpu.memory_space<semaphore_mem>>)
    %c13_i32 = arith.constant 13 : i32
    %92 = arith.addi %0, %c13_i32 : i32
    %93 = arith.index_cast %92 : i32 to index
    %94 = memref.load %arg1[%93] : memref<16xi32, #tpu.memory_space<smem>>
    %c0_i32_52 = arith.constant 0 : i32
    %c0_i32_53 = arith.constant 0 : i32
    %95 = tpu.memref_slice %arg2[%94, %c0_i32_53] : memref<128x128xf32, #tpu.memory_space<any>> -> memref<1x128xf32, #tpu.memory_space<any>>
    %c13_i32_54 = arith.constant 13 : i32
    %c0_i32_55 = arith.constant 0 : i32
    %96 = tpu.memref_slice %arg3[%c13_i32_54, %c0_i32_55] : memref<16x128xf32, #tpu.memory_space<vmem>> -> memref<1x128xf32, #tpu.memory_space<vmem>>
    %97 = tpu.memref_slice %arg4[%c0_i32_52] : memref<1x!tpu.dma_semaphore, #tpu.memory_space<semaphore_mem>> -> memref<1x!tpu.dma_semaphore, #tpu.memory_space<semaphore_mem>>
    %98 = tpu.memref_squeeze %97 : memref<1x!tpu.dma_semaphore, #tpu.memory_space<semaphore_mem>> -> memref<!tpu.dma_semaphore, #tpu.memory_space<semaphore_mem>>
    tpu.enqueue_dma source(%95 : memref<1x128xf32, #tpu.memory_space<any>>) target(%96 : memref<1x128xf32, #tpu.memory_space<vmem>>) target_semaphore(%98 : memref<!tpu.dma_semaphore, #tpu.memory_space<semaphore_mem>>)
    %c14_i32 = arith.constant 14 : i32
    %99 = arith.addi %0, %c14_i32 : i32
    %100 = arith.index_cast %99 : i32 to index
    %101 = memref.load %arg1[%100] : memref<16xi32, #tpu.memory_space<smem>>
    %c0_i32_56 = arith.constant 0 : i32
    %c0_i32_57 = arith.constant 0 : i32
    %102 = tpu.memref_slice %arg2[%101, %c0_i32_57] : memref<128x128xf32, #tpu.memory_space<any>> -> memref<1x128xf32, #tpu.memory_space<any>>
    %c14_i32_58 = arith.constant 14 : i32
    %c0_i32_59 = arith.constant 0 : i32
    %103 = tpu.memref_slice %arg3[%c14_i32_58, %c0_i32_59] : memref<16x128xf32, #tpu.memory_space<vmem>> -> memref<1x128xf32, #tpu.memory_space<vmem>>
    %104 = tpu.memref_slice %arg4[%c0_i32_56] : memref<1x!tpu.dma_semaphore, #tpu.memory_space<semaphore_mem>> -> memref<1x!tpu.dma_semaphore, #tpu.memory_space<semaphore_mem>>
    %105 = tpu.memref_squeeze %104 : memref<1x!tpu.dma_semaphore, #tpu.memory_space<semaphore_mem>> -> memref<!tpu.dma_semaphore, #tpu.memory_space<semaphore_mem>>
    tpu.enqueue_dma source(%102 : memref<1x128xf32, #tpu.memory_space<any>>) target(%103 : memref<1x128xf32, #tpu.memory_space<vmem>>) target_semaphore(%105 : memref<!tpu.dma_semaphore, #tpu.memory_space<semaphore_mem>>)
    %c15_i32 = arith.constant 15 : i32
    %106 = arith.addi %0, %c15_i32 : i32
    %107 = arith.index_cast %106 : i32 to index
    %108 = memref.load %arg1[%107] : memref<16xi32, #tpu.memory_space<smem>>
    %c0_i32_60 = arith.constant 0 : i32
    %c0_i32_61 = arith.constant 0 : i32
    %109 = tpu.memref_slice %arg2[%108, %c0_i32_61] : memref<128x128xf32, #tpu.memory_space<any>> -> memref<1x128xf32, #tpu.memory_space<any>>
    %c15_i32_62 = arith.constant 15 : i32
    %c0_i32_63 = arith.constant 0 : i32
    %110 = tpu.memref_slice %arg3[%c15_i32_62, %c0_i32_63] : memref<16x128xf32, #tpu.memory_space<vmem>> -> memref<1x128xf32, #tpu.memory_space<vmem>>
    %111 = tpu.memref_slice %arg4[%c0_i32_60] : memref<1x!tpu.dma_semaphore, #tpu.memory_space<semaphore_mem>> -> memref<1x!tpu.dma_semaphore, #tpu.memory_space<semaphore_mem>>
    %112 = tpu.memref_squeeze %111 : memref<1x!tpu.dma_semaphore, #tpu.memory_space<semaphore_mem>> -> memref<!tpu.dma_semaphore, #tpu.memory_space<semaphore_mem>>
    tpu.enqueue_dma source(%109 : memref<1x128xf32, #tpu.memory_space<any>>) target(%110 : memref<1x128xf32, #tpu.memory_space<vmem>>) target_semaphore(%112 : memref<!tpu.dma_semaphore, #tpu.memory_space<semaphore_mem>>)
    %c0_i32_64 = arith.constant 0 : i32
    %c0_i32_65 = arith.constant 0 : i32
    %c0_i32_66 = arith.constant 0 : i32
    %113 = tpu.memref_slice %arg2[%c0_i32_65, %c0_i32_66] : memref<128x128xf32, #tpu.memory_space<any>> -> memref<1x128xf32, #tpu.memory_space<any>>
    %c0_i32_67 = arith.constant 0 : i32
    %c0_i32_68 = arith.constant 0 : i32
    %114 = tpu.memref_slice %arg3[%c0_i32_67, %c0_i32_68] : memref<16x128xf32, #tpu.memory_space<vmem>> -> memref<1x128xf32, #tpu.memory_space<vmem>>
    %115 = tpu.memref_slice %arg4[%c0_i32_64] : memref<1x!tpu.dma_semaphore, #tpu.memory_space<semaphore_mem>> -> memref<1x!tpu.dma_semaphore, #tpu.memory_space<semaphore_mem>>
    %116 = tpu.memref_squeeze %115 : memref<1x!tpu.dma_semaphore, #tpu.memory_space<semaphore_mem>> -> memref<!tpu.dma_semaphore, #tpu.memory_space<semaphore_mem>>
    tpu.wait_dma2 semaphore(%116 : memref<!tpu.dma_semaphore, #tpu.memory_space<semaphore_mem>>) src(%113 : memref<1x128xf32, #tpu.memory_space<any>>) dst(%114 : memref<1x128xf32, #tpu.memory_space<vmem>>)
    %c0_i32_69 = arith.constant 0 : i32
    %c0_i32_70 = arith.constant 0 : i32
    %c0_i32_71 = arith.constant 0 : i32
    %117 = tpu.memref_slice %arg2[%c0_i32_70, %c0_i32_71] : memref<128x128xf32, #tpu.memory_space<any>> -> memref<1x128xf32, #tpu.memory_space<any>>
    %c1_i32_72 = arith.constant 1 : i32
    %c0_i32_73 = arith.constant 0 : i32
    %118 = tpu.memref_slice %arg3[%c1_i32_72, %c0_i32_73] : memref<16x128xf32, #tpu.memory_space<vmem>> -> memref<1x128xf32, #tpu.memory_space<vmem>>
    %119 = tpu.memref_slice %arg4[%c0_i32_69] : memref<1x!tpu.dma_semaphore, #tpu.memory_space<semaphore_mem>> -> memref<1x!tpu.dma_semaphore, #tpu.memory_space<semaphore_mem>>
    %120 = tpu.memref_squeeze %119 : memref<1x!tpu.dma_semaphore, #tpu.memory_space<semaphore_mem>> -> memref<!tpu.dma_semaphore, #tpu.memory_space<semaphore_mem>>
    tpu.wait_dma2 semaphore(%120 : memref<!tpu.dma_semaphore, #tpu.memory_space<semaphore_mem>>) src(%117 : memref<1x128xf32, #tpu.memory_space<any>>) dst(%118 : memref<1x128xf32, #tpu.memory_space<vmem>>)
    %c0_i32_74 = arith.constant 0 : i32
    %c0_i32_75 = arith.constant 0 : i32
    %c0_i32_76 = arith.constant 0 : i32
    %121 = tpu.memref_slice %arg2[%c0_i32_75, %c0_i32_76] : memref<128x128xf32, #tpu.memory_space<any>> -> memref<1x128xf32, #tpu.memory_space<any>>
    %c2_i32_77 = arith.constant 2 : i32
    %c0_i32_78 = arith.constant 0 : i32
    %122 = tpu.memref_slice %arg3[%c2_i32_77, %c0_i32_78] : memref<16x128xf32, #tpu.memory_space<vmem>> -> memref<1x128xf32, #tpu.memory_space<vmem>>
    %123 = tpu.memref_slice %arg4[%c0_i32_74] : memref<1x!tpu.dma_semaphore, #tpu.memory_space<semaphore_mem>> -> memref<1x!tpu.dma_semaphore, #tpu.memory_space<semaphore_mem>>
    %124 = tpu.memref_squeeze %123 : memref<1x!tpu.dma_semaphore, #tpu.memory_space<semaphore_mem>> -> memref<!tpu.dma_semaphore, #tpu.memory_space<semaphore_mem>>
    tpu.wait_dma2 semaphore(%124 : memref<!tpu.dma_semaphore, #tpu.memory_space<semaphore_mem>>) src(%121 : memref<1x128xf32, #tpu.memory_space<any>>) dst(%122 : memref<1x128xf32, #tpu.memory_space<vmem>>)
    %c0_i32_79 = arith.constant 0 : i32
    %c0_i32_80 = arith.constant 0 : i32
    %c0_i32_81 = arith.constant 0 : i32
    %125 = tpu.memref_slice %arg2[%c0_i32_80, %c0_i32_81] : memref<128x128xf32, #tpu.memory_space<any>> -> memref<1x128xf32, #tpu.memory_space<any>>
    %c3_i32_82 = arith.constant 3 : i32
    %c0_i32_83 = arith.constant 0 : i32
    %126 = tpu.memref_slice %arg3[%c3_i32_82, %c0_i32_83] : memref<16x128xf32, #tpu.memory_space<vmem>> -> memref<1x128xf32, #tpu.memory_space<vmem>>
    %127 = tpu.memref_slice %arg4[%c0_i32_79] : memref<1x!tpu.dma_semaphore, #tpu.memory_space<semaphore_mem>> -> memref<1x!tpu.dma_semaphore, #tpu.memory_space<semaphore_mem>>
    %128 = tpu.memref_squeeze %127 : memref<1x!tpu.dma_semaphore, #tpu.memory_space<semaphore_mem>> -> memref<!tpu.dma_semaphore, #tpu.memory_space<semaphore_mem>>
    tpu.wait_dma2 semaphore(%128 : memref<!tpu.dma_semaphore, #tpu.memory_space<semaphore_mem>>) src(%125 : memref<1x128xf32, #tpu.memory_space<any>>) dst(%126 : memref<1x128xf32, #tpu.memory_space<vmem>>)
    %c0_i32_84 = arith.constant 0 : i32
    %c0_i32_85 = arith.constant 0 : i32
    %c0_i32_86 = arith.constant 0 : i32
    %129 = tpu.memref_slice %arg2[%c0_i32_85, %c0_i32_86] : memref<128x128xf32, #tpu.memory_space<any>> -> memref<1x128xf32, #tpu.memory_space<any>>
    %c4_i32_87 = arith.constant 4 : i32
    %c0_i32_88 = arith.constant 0 : i32
    %130 = tpu.memref_slice %arg3[%c4_i32_87, %c0_i32_88] : memref<16x128xf32, #tpu.memory_space<vmem>> -> memref<1x128xf32, #tpu.memory_space<vmem>>
    %131 = tpu.memref_slice %arg4[%c0_i32_84] : memref<1x!tpu.dma_semaphore, #tpu.memory_space<semaphore_mem>> -> memref<1x!tpu.dma_semaphore, #tpu.memory_space<semaphore_mem>>
    %132 = tpu.memref_squeeze %131 : memref<1x!tpu.dma_semaphore, #tpu.memory_space<semaphore_mem>> -> memref<!tpu.dma_semaphore, #tpu.memory_space<semaphore_mem>>
    tpu.wait_dma2 semaphore(%132 : memref<!tpu.dma_semaphore, #tpu.memory_space<semaphore_mem>>) src(%129 : memref<1x128xf32, #tpu.memory_space<any>>) dst(%130 : memref<1x128xf32, #tpu.memory_space<vmem>>)
    %c0_i32_89 = arith.constant 0 : i32
    %c0_i32_90 = arith.constant 0 : i32
    %c0_i32_91 = arith.constant 0 : i32
    %133 = tpu.memref_slice %arg2[%c0_i32_90, %c0_i32_91] : memref<128x128xf32, #tpu.memory_space<any>> -> memref<1x128xf32, #tpu.memory_space<any>>
    %c5_i32_92 = arith.constant 5 : i32
    %c0_i32_93 = arith.constant 0 : i32
    %134 = tpu.memref_slice %arg3[%c5_i32_92, %c0_i32_93] : memref<16x128xf32, #tpu.memory_space<vmem>> -> memref<1x128xf32, #tpu.memory_space<vmem>>
    %135 = tpu.memref_slice %arg4[%c0_i32_89] : memref<1x!tpu.dma_semaphore, #tpu.memory_space<semaphore_mem>> -> memref<1x!tpu.dma_semaphore, #tpu.memory_space<semaphore_mem>>
    %136 = tpu.memref_squeeze %135 : memref<1x!tpu.dma_semaphore, #tpu.memory_space<semaphore_mem>> -> memref<!tpu.dma_semaphore, #tpu.memory_space<semaphore_mem>>
    tpu.wait_dma2 semaphore(%136 : memref<!tpu.dma_semaphore, #tpu.memory_space<semaphore_mem>>) src(%133 : memref<1x128xf32, #tpu.memory_space<any>>) dst(%134 : memref<1x128xf32, #tpu.memory_space<vmem>>)
    %c0_i32_94 = arith.constant 0 : i32
    %c0_i32_95 = arith.constant 0 : i32
    %c0_i32_96 = arith.constant 0 : i32
    %137 = tpu.memref_slice %arg2[%c0_i32_95, %c0_i32_96] : memref<128x128xf32, #tpu.memory_space<any>> -> memref<1x128xf32, #tpu.memory_space<any>>
    %c6_i32_97 = arith.constant 6 : i32
    %c0_i32_98 = arith.constant 0 : i32
    %138 = tpu.memref_slice %arg3[%c6_i32_97, %c0_i32_98] : memref<16x128xf32, #tpu.memory_space<vmem>> -> memref<1x128xf32, #tpu.memory_space<vmem>>
    %139 = tpu.memref_slice %arg4[%c0_i32_94] : memref<1x!tpu.dma_semaphore, #tpu.memory_space<semaphore_mem>> -> memref<1x!tpu.dma_semaphore, #tpu.memory_space<semaphore_mem>>
    %140 = tpu.memref_squeeze %139 : memref<1x!tpu.dma_semaphore, #tpu.memory_space<semaphore_mem>> -> memref<!tpu.dma_semaphore, #tpu.memory_space<semaphore_mem>>
    tpu.wait_dma2 semaphore(%140 : memref<!tpu.dma_semaphore, #tpu.memory_space<semaphore_mem>>) src(%137 : memref<1x128xf32, #tpu.memory_space<any>>) dst(%138 : memref<1x128xf32, #tpu.memory_space<vmem>>)
    %c0_i32_99 = arith.constant 0 : i32
    %c0_i32_100 = arith.constant 0 : i32
    %c0_i32_101 = arith.constant 0 : i32
    %141 = tpu.memref_slice %arg2[%c0_i32_100, %c0_i32_101] : memref<128x128xf32, #tpu.memory_space<any>> -> memref<1x128xf32, #tpu.memory_space<any>>
    %c7_i32_102 = arith.constant 7 : i32
    %c0_i32_103 = arith.constant 0 : i32
    %142 = tpu.memref_slice %arg3[%c7_i32_102, %c0_i32_103] : memref<16x128xf32, #tpu.memory_space<vmem>> -> memref<1x128xf32, #tpu.memory_space<vmem>>
    %143 = tpu.memref_slice %arg4[%c0_i32_99] : memref<1x!tpu.dma_semaphore, #tpu.memory_space<semaphore_mem>> -> memref<1x!tpu.dma_semaphore, #tpu.memory_space<semaphore_mem>>
    %144 = tpu.memref_squeeze %143 : memref<1x!tpu.dma_semaphore, #tpu.memory_space<semaphore_mem>> -> memref<!tpu.dma_semaphore, #tpu.memory_space<semaphore_mem>>
    tpu.wait_dma2 semaphore(%144 : memref<!tpu.dma_semaphore, #tpu.memory_space<semaphore_mem>>) src(%141 : memref<1x128xf32, #tpu.memory_space<any>>) dst(%142 : memref<1x128xf32, #tpu.memory_space<vmem>>)
    %c0_i32_104 = arith.constant 0 : i32
    %c0_i32_105 = arith.constant 0 : i32
    %c0_i32_106 = arith.constant 0 : i32
    %145 = tpu.memref_slice %arg2[%c0_i32_105, %c0_i32_106] : memref<128x128xf32, #tpu.memory_space<any>> -> memref<1x128xf32, #tpu.memory_space<any>>
    %c8_i32_107 = arith.constant 8 : i32
    %c0_i32_108 = arith.constant 0 : i32
    %146 = tpu.memref_slice %arg3[%c8_i32_107, %c0_i32_108] : memref<16x128xf32, #tpu.memory_space<vmem>> -> memref<1x128xf32, #tpu.memory_space<vmem>>
    %147 = tpu.memref_slice %arg4[%c0_i32_104] : memref<1x!tpu.dma_semaphore, #tpu.memory_space<semaphore_mem>> -> memref<1x!tpu.dma_semaphore, #tpu.memory_space<semaphore_mem>>
    %148 = tpu.memref_squeeze %147 : memref<1x!tpu.dma_semaphore, #tpu.memory_space<semaphore_mem>> -> memref<!tpu.dma_semaphore, #tpu.memory_space<semaphore_mem>>
    tpu.wait_dma2 semaphore(%148 : memref<!tpu.dma_semaphore, #tpu.memory_space<semaphore_mem>>) src(%145 : memref<1x128xf32, #tpu.memory_space<any>>) dst(%146 : memref<1x128xf32, #tpu.memory_space<vmem>>)
    %c0_i32_109 = arith.constant 0 : i32
    %c0_i32_110 = arith.constant 0 : i32
    %c0_i32_111 = arith.constant 0 : i32
    %149 = tpu.memref_slice %arg2[%c0_i32_110, %c0_i32_111] : memref<128x128xf32, #tpu.memory_space<any>> -> memref<1x128xf32, #tpu.memory_space<any>>
    %c9_i32_112 = arith.constant 9 : i32
    %c0_i32_113 = arith.constant 0 : i32
    %150 = tpu.memref_slice %arg3[%c9_i32_112, %c0_i32_113] : memref<16x128xf32, #tpu.memory_space<vmem>> -> memref<1x128xf32, #tpu.memory_space<vmem>>
    %151 = tpu.memref_slice %arg4[%c0_i32_109] : memref<1x!tpu.dma_semaphore, #tpu.memory_space<semaphore_mem>> -> memref<1x!tpu.dma_semaphore, #tpu.memory_space<semaphore_mem>>
    %152 = tpu.memref_squeeze %151 : memref<1x!tpu.dma_semaphore, #tpu.memory_space<semaphore_mem>> -> memref<!tpu.dma_semaphore, #tpu.memory_space<semaphore_mem>>
    tpu.wait_dma2 semaphore(%152 : memref<!tpu.dma_semaphore, #tpu.memory_space<semaphore_mem>>) src(%149 : memref<1x128xf32, #tpu.memory_space<any>>) dst(%150 : memref<1x128xf32, #tpu.memory_space<vmem>>)
    %c0_i32_114 = arith.constant 0 : i32
    %c0_i32_115 = arith.constant 0 : i32
    %c0_i32_116 = arith.constant 0 : i32
    %153 = tpu.memref_slice %arg2[%c0_i32_115, %c0_i32_116] : memref<128x128xf32, #tpu.memory_space<any>> -> memref<1x128xf32, #tpu.memory_space<any>>
    %c10_i32_117 = arith.constant 10 : i32
    %c0_i32_118 = arith.constant 0 : i32
    %154 = tpu.memref_slice %arg3[%c10_i32_117, %c0_i32_118] : memref<16x128xf32, #tpu.memory_space<vmem>> -> memref<1x128xf32, #tpu.memory_space<vmem>>
    %155 = tpu.memref_slice %arg4[%c0_i32_114] : memref<1x!tpu.dma_semaphore, #tpu.memory_space<semaphore_mem>> -> memref<1x!tpu.dma_semaphore, #tpu.memory_space<semaphore_mem>>
    %156 = tpu.memref_squeeze %155 : memref<1x!tpu.dma_semaphore, #tpu.memory_space<semaphore_mem>> -> memref<!tpu.dma_semaphore, #tpu.memory_space<semaphore_mem>>
    tpu.wait_dma2 semaphore(%156 : memref<!tpu.dma_semaphore, #tpu.memory_space<semaphore_mem>>) src(%153 : memref<1x128xf32, #tpu.memory_space<any>>) dst(%154 : memref<1x128xf32, #tpu.memory_space<vmem>>)
    %c0_i32_119 = arith.constant 0 : i32
    %c0_i32_120 = arith.constant 0 : i32
    %c0_i32_121 = arith.constant 0 : i32
    %157 = tpu.memref_slice %arg2[%c0_i32_120, %c0_i32_121] : memref<128x128xf32, #tpu.memory_space<any>> -> memref<1x128xf32, #tpu.memory_space<any>>
    %c11_i32_122 = arith.constant 11 : i32
    %c0_i32_123 = arith.constant 0 : i32
    %158 = tpu.memref_slice %arg3[%c11_i32_122, %c0_i32_123] : memref<16x128xf32, #tpu.memory_space<vmem>> -> memref<1x128xf32, #tpu.memory_space<vmem>>
    %159 = tpu.memref_slice %arg4[%c0_i32_119] : memref<1x!tpu.dma_semaphore, #tpu.memory_space<semaphore_mem>> -> memref<1x!tpu.dma_semaphore, #tpu.memory_space<semaphore_mem>>
    %160 = tpu.memref_squeeze %159 : memref<1x!tpu.dma_semaphore, #tpu.memory_space<semaphore_mem>> -> memref<!tpu.dma_semaphore, #tpu.memory_space<semaphore_mem>>
    tpu.wait_dma2 semaphore(%160 : memref<!tpu.dma_semaphore, #tpu.memory_space<semaphore_mem>>) src(%157 : memref<1x128xf32, #tpu.memory_space<any>>) dst(%158 : memref<1x128xf32, #tpu.memory_space<vmem>>)
    %c0_i32_124 = arith.constant 0 : i32
    %c0_i32_125 = arith.constant 0 : i32
    %c0_i32_126 = arith.constant 0 : i32
    %161 = tpu.memref_slice %arg2[%c0_i32_125, %c0_i32_126] : memref<128x128xf32, #tpu.memory_space<any>> -> memref<1x128xf32, #tpu.memory_space<any>>
    %c12_i32_127 = arith.constant 12 : i32
    %c0_i32_128 = arith.constant 0 : i32
    %162 = tpu.memref_slice %arg3[%c12_i32_127, %c0_i32_128] : memref<16x128xf32, #tpu.memory_space<vmem>> -> memref<1x128xf32, #tpu.memory_space<vmem>>
    %163 = tpu.memref_slice %arg4[%c0_i32_124] : memref<1x!tpu.dma_semaphore, #tpu.memory_space<semaphore_mem>> -> memref<1x!tpu.dma_semaphore, #tpu.memory_space<semaphore_mem>>
    %164 = tpu.memref_squeeze %163 : memref<1x!tpu.dma_semaphore, #tpu.memory_space<semaphore_mem>> -> memref<!tpu.dma_semaphore, #tpu.memory_space<semaphore_mem>>
    tpu.wait_dma2 semaphore(%164 : memref<!tpu.dma_semaphore, #tpu.memory_space<semaphore_mem>>) src(%161 : memref<1x128xf32, #tpu.memory_space<any>>) dst(%162 : memref<1x128xf32, #tpu.memory_space<vmem>>)
    %c0_i32_129 = arith.constant 0 : i32
    %c0_i32_130 = arith.constant 0 : i32
    %c0_i32_131 = arith.constant 0 : i32
    %165 = tpu.memref_slice %arg2[%c0_i32_130, %c0_i32_131] : memref<128x128xf32, #tpu.memory_space<any>> -> memref<1x128xf32, #tpu.memory_space<any>>
    %c13_i32_132 = arith.constant 13 : i32
    %c0_i32_133 = arith.constant 0 : i32
    %166 = tpu.memref_slice %arg3[%c13_i32_132, %c0_i32_133] : memref<16x128xf32, #tpu.memory_space<vmem>> -> memref<1x128xf32, #tpu.memory_space<vmem>>
    %167 = tpu.memref_slice %arg4[%c0_i32_129] : memref<1x!tpu.dma_semaphore, #tpu.memory_space<semaphore_mem>> -> memref<1x!tpu.dma_semaphore, #tpu.memory_space<semaphore_mem>>
    %168 = tpu.memref_squeeze %167 : memref<1x!tpu.dma_semaphore, #tpu.memory_space<semaphore_mem>> -> memref<!tpu.dma_semaphore, #tpu.memory_space<semaphore_mem>>
    tpu.wait_dma2 semaphore(%168 : memref<!tpu.dma_semaphore, #tpu.memory_space<semaphore_mem>>) src(%165 : memref<1x128xf32, #tpu.memory_space<any>>) dst(%166 : memref<1x128xf32, #tpu.memory_space<vmem>>)
    %c0_i32_134 = arith.constant 0 : i32
    %c0_i32_135 = arith.constant 0 : i32
    %c0_i32_136 = arith.constant 0 : i32
    %169 = tpu.memref_slice %arg2[%c0_i32_135, %c0_i32_136] : memref<128x128xf32, #tpu.memory_space<any>> -> memref<1x128xf32, #tpu.memory_space<any>>
    %c14_i32_137 = arith.constant 14 : i32
    %c0_i32_138 = arith.constant 0 : i32
    %170 = tpu.memref_slice %arg3[%c14_i32_137, %c0_i32_138] : memref<16x128xf32, #tpu.memory_space<vmem>> -> memref<1x128xf32, #tpu.memory_space<vmem>>
    %171 = tpu.memref_slice %arg4[%c0_i32_134] : memref<1x!tpu.dma_semaphore, #tpu.memory_space<semaphore_mem>> -> memref<1x!tpu.dma_semaphore, #tpu.memory_space<semaphore_mem>>
    %172 = tpu.memref_squeeze %171 : memref<1x!tpu.dma_semaphore, #tpu.memory_space<semaphore_mem>> -> memref<!tpu.dma_semaphore, #tpu.memory_space<semaphore_mem>>
    tpu.wait_dma2 semaphore(%172 : memref<!tpu.dma_semaphore, #tpu.memory_space<semaphore_mem>>) src(%169 : memref<1x128xf32, #tpu.memory_space<any>>) dst(%170 : memref<1x128xf32, #tpu.memory_space<vmem>>)
    %c0_i32_139 = arith.constant 0 : i32
    %c0_i32_140 = arith.constant 0 : i32
    %c0_i32_141 = arith.constant 0 : i32
    %173 = tpu.memref_slice %arg2[%c0_i32_140, %c0_i32_141] : memref<128x128xf32, #tpu.memory_space<any>> -> memref<1x128xf32, #tpu.memory_space<any>>
    %c15_i32_142 = arith.constant 15 : i32
    %c0_i32_143 = arith.constant 0 : i32
    %174 = tpu.memref_slice %arg3[%c15_i32_142, %c0_i32_143] : memref<16x128xf32, #tpu.memory_space<vmem>> -> memref<1x128xf32, #tpu.memory_space<vmem>>
    %175 = tpu.memref_slice %arg4[%c0_i32_139] : memref<1x!tpu.dma_semaphore, #tpu.memory_space<semaphore_mem>> -> memref<1x!tpu.dma_semaphore, #tpu.memory_space<semaphore_mem>>
    %176 = tpu.memref_squeeze %175 : memref<1x!tpu.dma_semaphore, #tpu.memory_space<semaphore_mem>> -> memref<!tpu.dma_semaphore, #tpu.memory_space<semaphore_mem>>
    tpu.wait_dma2 semaphore(%176 : memref<!tpu.dma_semaphore, #tpu.memory_space<semaphore_mem>>) src(%173 : memref<1x128xf32, #tpu.memory_space<any>>) dst(%174 : memref<1x128xf32, #tpu.memory_space<vmem>>)
    return
  }
  func.func @transform_1(%arg0: i32, %arg1: memref<16xi32, #tpu.memory_space<smem>>) -> (i32, i32) {
    %c0_i32 = arith.constant 0 : i32
    %c0_i32_0 = arith.constant 0 : i32
    return %arg0, %c0_i32 : i32, i32
  }
}

</mosaic_0001>

<llo_original>
// kernel: tpu_custom_call.1
$region0: #{tpu_custom_call.1}
  #allocation0 [shape = 'u32[]', space=smem, size = 0x4, offset = 0x4, fixed_abs, tag = 'smem constant byte address 0x4 - core index']
  #allocation1 [shape = 'u32[72,128]{1,0:T(1,128)}', space=vmem, size = 0x9000, scoped, tag = 'internal scratch']
  #allocation2 [shape = 's32[1]{0}', space=sflag, size = 0x4, scoped, tag = 'scratch operand']
  #allocation3 [shape = 's32[1]{0}', space=sflag, size = 0x4, scoped, tag = 'scoped memory for tpu_custom_call.1']
  #allocation4 [shape = 'u8[512]{0}', space=smem, size = 0x200, scoped, tag = 'prefetched SMEM operand 0']
  #allocation7 [shape = 's32[]', space=sflag, size = 0x4, offset = 0, fixed_abs, tag = 'sflag constant byte address 0x0 - dummy sync flag']
  #allocation8 [shape = 's32[]', space=sflag, size = 0x4, offset = 0, fixed_abs, tag = 'sflag constant byte address 0x0 - dummy sync flag']
  #allocation9 [shape = 'u32[]', space=smem, size = 0x4, offset = 0x44, fixed_abs, tag = 'smem constant byte address 0x44 - assertion arg 0']
  #allocation10 [shape = 'u32[]', space=smem, size = 0x4, offset = 0x48, fixed_abs, tag = 'smem constant byte address 0x48 - assertion arg 1']
  #allocation11 [shape = 's32[]', space=sflag, size = 0x4, offset = 0, fixed_abs, tag = 'sflag constant byte address 0x0 - dummy sync flag']
  #allocation12 [shape = 's32[]', space=sflag, size = 0x4, offset = 0, fixed_abs, tag = 'sflag constant byte address 0x0 - dummy sync flag']
  #allocation13 [shape = 's32[]', space=sflag, size = 0x4, offset = 0, fixed_abs, tag = 'sflag constant byte address 0x0 - dummy sync flag']
  #allocation14 [shape = 's32[]', space=sflag, size = 0x4, offset = 0, fixed_abs, tag = 'sflag constant byte address 0x0 - dummy sync flag']
  #allocation15 [shape = 's32[]', space=sflag, size = 0x4, offset = 0, fixed_abs, tag = 'sflag constant byte address 0x0 - dummy sync flag']
  #allocation16 [shape = 's32[]', space=sflag, size = 0x4, offset = 0, fixed_abs, tag = 'sflag constant byte address 0x0 - dummy sync flag']
  #allocation17 [shape = 's32[]', space=sflag, size = 0x4, offset = 0, fixed_abs, tag = 'sflag constant byte address 0x0 - dummy sync flag']
  #allocation18 [shape = 's32[]', space=sflag, size = 0x4, offset = 0, fixed_abs, tag = 'sflag constant byte address 0x0 - dummy sync flag']
  #allocation19 [shape = 's32[]', space=sflag, size = 0x4, offset = 0, fixed_abs, tag = 'sflag constant byte address 0x0 - dummy sync flag']
  #allocation20 [shape = 's32[]', space=sflag, size = 0x4, offset = 0, fixed_abs, tag = 'sflag constant byte address 0x0 - dummy sync flag']
  #allocation21 [shape = 's32[]', space=sflag, size = 0x4, offset = 0, fixed_abs, tag = 'sflag constant byte address 0x0 - dummy sync flag']
  #allocation22 [shape = 's32[]', space=sflag, size = 0x4, offset = 0, fixed_abs, tag = 'sflag constant byte address 0x0 - dummy sync flag']
  #allocation23 [shape = 's32[]', space=sflag, size = 0x4, offset = 0, fixed_abs, tag = 'sflag constant byte address 0x0 - dummy sync flag']
  #allocation24 [shape = 's32[]', space=sflag, size = 0x4, offset = 0, fixed_abs, tag = 'sflag constant byte address 0x0 - dummy sync flag']
  #allocation25 [shape = 's32[]', space=sflag, size = 0x4, offset = 0, fixed_abs, tag = 'sflag constant byte address 0x0 - dummy sync flag']
  #allocation26 [shape = 's32[]', space=sflag, size = 0x4, offset = 0, fixed_abs, tag = 'sflag constant byte address 0x0 - dummy sync flag']
  #allocation27 [shape = 's32[]', space=sflag, size = 0x4, offset = 0, fixed_abs, tag = 'sflag constant byte address 0x0 - dummy sync flag']
  #allocation28 [shape = 's32[]', space=sflag, size = 0x4, offset = 0, fixed_abs, tag = 'sflag constant byte address 0x0 - dummy sync flag']
  #allocation29 [shape = 's32[]', space=sflag, size = 0x4, offset = 0, fixed_abs, tag = 'sflag constant byte address 0x0 - dummy sync flag']
  #allocation30 [shape = 's32[]', space=sflag, size = 0x4, offset = 0, fixed_abs, tag = 'sflag constant byte address 0x0 - dummy sync flag']
  #allocation31 [shape = 's32[]', space=sflag, size = 0x4, offset = 0, fixed_abs, tag = 'sflag constant byte address 0x0 - dummy sync flag']
  #allocation32 [shape = 's32[]', space=sflag, size = 0x4, offset = 0, fixed_abs, tag = 'sflag constant byte address 0x0 - dummy sync flag']
  #allocation33 [shape = 's32[]', space=sflag, size = 0x4, offset = 0, fixed_abs, tag = 'sflag constant byte address 0x0 - dummy sync flag']
  #allocation34 [shape = 's32[]', space=sflag, size = 0x4, offset = 0, fixed_abs, tag = 'sflag constant byte address 0x0 - dummy sync flag']
  #allocation35 [shape = 's32[]', space=sflag, size = 0x4, offset = 0, fixed_abs, tag = 'sflag constant byte address 0x0 - dummy sync flag']
  #allocation36 [shape = 's32[]', space=sflag, size = 0x4, offset = 0, fixed_abs, tag = 'sflag constant byte address 0x0 - dummy sync flag']
  #allocation37 [shape = 's32[]', space=sflag, size = 0x4, offset = 0, fixed_abs, tag = 'sflag constant byte address 0x0 - dummy sync flag']
  #allocation38 [shape = 's32[]', space=sflag, size = 0x4, offset = 0, fixed_abs, tag = 'sflag constant byte address 0x0 - dummy sync flag']
  #allocation39 [shape = 's32[]', space=sflag, size = 0x4, offset = 0, fixed_abs, tag = 'sflag constant byte address 0x0 - dummy sync flag']
  #allocation40 [shape = 's32[]', space=sflag, size = 0x4, offset = 0, fixed_abs, tag = 'sflag constant byte address 0x0 - dummy sync flag']
  %s0 = inlined_call_operand.hbm [shape: s32[16], index: 0, kind: input, shape index: {}]
  %s1 = inlined_call_operand.hbm [shape: f32[128,128], index: 1, kind: input, shape index: {}]
  %s2 = inlined_call_operand.hbm [shape: f32[16,128], index: 2, kind: output, shape index: {}]
  %s3 = sld [smem:[#allocation0]]
  $region74: #{tpu_custom_call.1} parent=0
    _
  %s5 = ssub.s32 1, %s3
  %s6 = scalar_select 0, %s5, %s3
  %s8 = sshll.u32 %s0, 4
  %s9 = int_to_ptr.hbm [resolvable:$true] %s8
  %11 = dma.hbm_to_smem %s9, 16, [#allocation4], [#allocation3]
  %13 = dma.done [#allocation3], 16
  %14 = sfence
  $region1: #{tpu_custom_call.1} parent=0
    #allocation5 [shape = 'u8[8192]{0}', space=vmem, size = 0x2000, scoped, tag = 'output window, operand 0, single buffered']
    #allocation6 [shape = 's32[1]{0}', space=sflag, size = 0x4, scoped, tag = 'scoped memory for tpu_custom_call.1']
    %15 = vsyncpa [#allocation6], 0
    %s16 = smul.u32 0, 16
    %s17 = sld [smem:[#allocation4 + %s16]]
    %s18 = scalar_lea.hbm %s1, %s17
    // Predicated region
    $region2: #{tpu_custom_call.1} parent=1 // pred_check
      _
    $region3: #{tpu_custom_call.1} parent=1 // pred_check_branch
      %20 = sbr.rel target = $region5
    $region4: #{tpu_custom_call.1} parent=1 // pred_region
      %21 = sst [smem:[#allocation9]] [#allocation8]
      %22 = sst [smem:[#allocation10]] [#allocation7]
    $region5: #{tpu_custom_call.1} parent=1 // pred_fallthru
      _
    %24 = shalt.err (0)
    %s26 = sshll.u32 %s18, 4
    %s27 = int_to_ptr.hbm [resolvable:$true] %s26
    %s28 = sshll.u32 [#allocation5], 4
    %s29 = int_to_ptr.vmem [resolvable:$true] %s28
    %31 = dma.hbm_to_vmem [thread:$0]  %s27, 16, %s29, [#allocation2]
    %s32 = sadd.s32 %s16, 1
    %s33 = sld [smem:[#allocation4 + %s32]]
    %s34 = scalar_lea.hbm %s1, %s33
    %s35 = scalar_lea.vmem [#allocation5], 1
    // Predicated region
    $region6: #{tpu_custom_call.1} parent=1 // pred_check
      _
    $region7: #{tpu_custom_call.1} parent=1 // pred_check_branch
      %37 = sbr.rel target = $region9
    $region8: #{tpu_custom_call.1} parent=1 // pred_region
      %38 = sst [smem:[#allocation9]] [#allocation12]
      %39 = sst [smem:[#allocation10]] [#allocation11]
    $region9: #{tpu_custom_call.1} parent=1 // pred_fallthru
      _
    %41 = shalt.err (0)
    %s43 = sshll.u32 %s34, 4
    %s44 = int_to_ptr.hbm [resolvable:$true] %s43
    %s45 = sshll.u32 %s35, 4
    %s46 = int_to_ptr.vmem [resolvable:$true] %s45
    %48 = dma.hbm_to_vmem [thread:$0]  %s44, 16, %s46, [#allocation2]
    %s49 = sadd.s32 %s16, 2
    %s50 = sld [smem:[#allocation4 + %s49]]
    %s51 = scalar_lea.hbm %s1, %s50
    %s52 = scalar_lea.vmem [#allocation5], 2
    // Predicated region
    $region10: #{tpu_custom_call.1} parent=1 // pred_check
      _
    $region11: #{tpu_custom_call.1} parent=1 // pred_check_branch
      %54 = sbr.rel target = $region13
    $region12: #{tpu_custom_call.1} parent=1 // pred_region
      %55 = sst [smem:[#allocation9]] [#allocation14]
      %56 = sst [smem:[#allocation10]] [#allocation13]
    $region13: #{tpu_custom_call.1} parent=1 // pred_fallthru
      _
    %58 = shalt.err (0)
    %s60 = sshll.u32 %s51, 4
    %s61 = int_to_ptr.hbm [resolvable:$true] %s60
    %s62 = sshll.u32 %s52, 4
    %s63 = int_to_ptr.vmem [resolvable:$true] %s62
    %65 = dma.hbm_to_vmem [thread:$0]  %s61, 16, %s63, [#allocation2]
    %s66 = sadd.s32 %s16, 3
    %s67 = sld [smem:[#allocation4 + %s66]]
    %s68 = scalar_lea.hbm %s1, %s67
    %s69 = scalar_lea.vmem [#allocation5], 3
    // Predicated region
    $region14: #{tpu_custom_call.1} parent=1 // pred_check
      _
    $region15: #{tpu_custom_call.1} parent=1 // pred_check_branch
      %71 = sbr.rel target = $region17
    $region16: #{tpu_custom_call.1} parent=1 // pred_region
      %72 = sst [smem:[#allocation9]] [#allocation16]
      %73 = sst [smem:[#allocation10]] [#allocation15]
    $region17: #{tpu_custom_call.1} parent=1 // pred_fallthru
      _
    %75 = shalt.err (0)
    %s77 = sshll.u32 %s68, 4
    %s78 = int_to_ptr.hbm [resolvable:$true] %s77
    %s79 = sshll.u32 %s69, 4
    %s80 = int_to_ptr.vmem [resolvable:$true] %s79
    %82 = dma.hbm_to_vmem [thread:$0]  %s78, 16, %s80, [#allocation2]
    %s83 = sadd.s32 %s16, 4
    %s84 = sld [smem:[#allocation4 + %s83]]
    %s85 = scalar_lea.hbm %s1, %s84
    %s86 = scalar_lea.vmem [#allocation5], 4
    // Predicated region
    $region18: #{tpu_custom_call.1} parent=1 // pred_check
      _
    $region19: #{tpu_custom_call.1} parent=1 // pred_check_branch
      %88 = sbr.rel target = $region21
    $region20: #{tpu_custom_call.1} parent=1 // pred_region
      %89 = sst [smem:[#allocation9]] [#allocation18]
      %90 = sst [smem:[#allocation10]] [#allocation17]
    $region21: #{tpu_custom_call.1} parent=1 // pred_fallthru
      _
    %92 = shalt.err (0)
    %s94 = sshll.u32 %s85, 4
    %s95 = int_to_ptr.hbm [resolvable:$true] %s94
    %s96 = sshll.u32 %s86, 4
    %s97 = int_to_ptr.vmem [resolvable:$true] %s96
    %99 = dma.hbm_to_vmem [thread:$0]  %s95, 16, %s97, [#allocation2]
    %s100 = sadd.s32 %s16, 5
    %s101 = sld [smem:[#allocation4 + %s100]]
    %s102 = scalar_lea.hbm %s1, %s101
    %s103 = scalar_lea.vmem [#allocation5], 5
    // Predicated region
    $region22: #{tpu_custom_call.1} parent=1 // pred_check
      _
    $region23: #{tpu_custom_call.1} parent=1 // pred_check_branch
      %105 = sbr.rel target = $region25
    $region24: #{tpu_custom_call.1} parent=1 // pred_region
      %106 = sst [smem:[#allocation9]] [#allocation20]
      %107 = sst [smem:[#allocation10]] [#allocation19]
    $region25: #{tpu_custom_call.1} parent=1 // pred_fallthru
      _
    %109 = shalt.err (0)
    %s111 = sshll.u32 %s102, 4
    %s112 = int_to_ptr.hbm [resolvable:$true] %s111
    %s113 = sshll.u32 %s103, 4
    %s114 = int_to_ptr.vmem [resolvable:$true] %s113
    %116 = dma.hbm_to_vmem [thread:$0]  %s112, 16, %s114, [#allocation2]
    %s117 = sadd.s32 %s16, 6
    %s118 = sld [smem:[#allocation4 + %s117]]
    %s119 = scalar_lea.hbm %s1, %s118
    %s120 = scalar_lea.vmem [#allocation5], 6
    // Predicated region
    $region26: #{tpu_custom_call.1} parent=1 // pred_check
      _
    $region27: #{tpu_custom_call.1} parent=1 // pred_check_branch
      %122 = sbr.rel target = $region29
    $region28: #{tpu_custom_call.1} parent=1 // pred_region
      %123 = sst [smem:[#allocation9]] [#allocation22]
      %124 = sst [smem:[#allocation10]] [#allocation21]
    $region29: #{tpu_custom_call.1} parent=1 // pred_fallthru
      _
    %126 = shalt.err (0)
    %s128 = sshll.u32 %s119, 4
    %s129 = int_to_ptr.hbm [resolvable:$true] %s128
    %s130 = sshll.u32 %s120, 4
    %s131 = int_to_ptr.vmem [resolvable:$true] %s130
    %133 = dma.hbm_to_vmem [thread:$0]  %s129, 16, %s131, [#allocation2]
    %s134 = sadd.s32 %s16, 7
    %s135 = sld [smem:[#allocation4 + %s134]]
    %s136 = scalar_lea.hbm %s1, %s135
    %s137 = scalar_lea.vmem [#allocation5], 7
    // Predicated region
    $region30: #{tpu_custom_call.1} parent=1 // pred_check
      _
    $region31: #{tpu_custom_call.1} parent=1 // pred_check_branch
      %139 = sbr.rel target = $region33
    $region32: #{tpu_custom_call.1} parent=1 // pred_region
      %140 = sst [smem:[#allocation9]] [#allocation24]
      %141 = sst [smem:[#allocation10]] [#allocation23]
    $region33: #{tpu_custom_call.1} parent=1 // pred_fallthru
      _
    %143 = shalt.err (0)
    %s145 = sshll.u32 %s136, 4
    %s146 = int_to_ptr.hbm [resolvable:$true] %s145
    %s147 = sshll.u32 %s137, 4
    %s148 = int_to_ptr.vmem [resolvable:$true] %s147
    %150 = dma.hbm_to_vmem [thread:$0]  %s146, 16, %s148, [#allocation2]
    %s151 = sadd.s32 %s16, 8
    %s152 = sld [smem:[#allocation4 + %s151]]
    %s153 = scalar_lea.hbm %s1, %s152
    %s154 = scalar_lea.vmem [#allocation5], 8
    // Predicated region
    $region34: #{tpu_custom_call.1} parent=1 // pred_check
      _
    $region35: #{tpu_custom_call.1} parent=1 // pred_check_branch
      %156 = sbr.rel target = $region37
    $region36: #{tpu_custom_call.1} parent=1 // pred_region
      %157 = sst [smem:[#allocation9]] [#allocation26]
      %158 = sst [smem:[#allocation10]] [#allocation25]
    $region37: #{tpu_custom_call.1} parent=1 // pred_fallthru
      _
    %160 = shalt.err (0)
    %s162 = sshll.u32 %s153, 4
    %s163 = int_to_ptr.hbm [resolvable:$true] %s162
    %s164 = sshll.u32 %s154, 4
    %s165 = int_to_ptr.vmem [resolvable:$true] %s164
    %167 = dma.hbm_to_vmem [thread:$0]  %s163, 16, %s165, [#allocation2]
    %s168 = sadd.s32 %s16, 9
    %s169 = sld [smem:[#allocation4 + %s168]]
    %s170 = scalar_lea.hbm %s1, %s169
    %s171 = scalar_lea.vmem [#allocation5], 9
    // Predicated region
    $region38: #{tpu_custom_call.1} parent=1 // pred_check
      _
    $region39: #{tpu_custom_call.1} parent=1 // pred_check_branch
      %173 = sbr.rel target = $region41
    $region40: #{tpu_custom_call.1} parent=1 // pred_region
      %174 = sst [smem:[#allocation9]] [#allocation28]
      %175 = sst [smem:[#allocation10]] [#allocation27]
    $region41: #{tpu_custom_call.1} parent=1 // pred_fallthru
      _
    %177 = shalt.err (0)
    %s179 = sshll.u32 %s170, 4
    %s180 = int_to_ptr.hbm [resolvable:$true] %s179
    %s181 = sshll.u32 %s171, 4
    %s182 = int_to_ptr.vmem [resolvable:$true] %s181
    %184 = dma.hbm_to_vmem [thread:$0]  %s180, 16, %s182, [#allocation2]
    %s185 = sadd.s32 %s16, 10
    %s186 = sld [smem:[#allocation4 + %s185]]
    %s187 = scalar_lea.hbm %s1, %s186
    %s188 = scalar_lea.vmem [#allocation5], 10
    // Predicated region
    $region42: #{tpu_custom_call.1} parent=1 // pred_check
      _
    $region43: #{tpu_custom_call.1} parent=1 // pred_check_branch
      %190 = sbr.rel target = $region45
    $region44: #{tpu_custom_call.1} parent=1 // pred_region
      %191 = sst [smem:[#allocation9]] [#allocation30]
      %192 = sst [smem:[#allocation10]] [#allocation29]
    $region45: #{tpu_custom_call.1} parent=1 // pred_fallthru
      _
    %194 = shalt.err (0)
    %s196 = sshll.u32 %s187, 4
    %s197 = int_to_ptr.hbm [resolvable:$true] %s196
    %s198 = sshll.u32 %s188, 4
    %s199 = int_to_ptr.vmem [resolvable:$true] %s198
    %201 = dma.hbm_to_vmem [thread:$0]  %s197, 16, %s199, [#allocation2]
    %s202 = sadd.s32 %s16, 11
    %s203 = sld [smem:[#allocation4 + %s202]]
    %s204 = scalar_lea.hbm %s1, %s203
    %s205 = scalar_lea.vmem [#allocation5], 11
    // Predicated region
    $region46: #{tpu_custom_call.1} parent=1 // pred_check
      _
    $region47: #{tpu_custom_call.1} parent=1 // pred_check_branch
      %207 = sbr.rel target = $region49
    $region48: #{tpu_custom_call.1} parent=1 // pred_region
      %208 = sst [smem:[#allocation9]] [#allocation32]
      %209 = sst [smem:[#allocation10]] [#allocation31]
    $region49: #{tpu_custom_call.1} parent=1 // pred_fallthru
      _
    %211 = shalt.err (0)
    %s213 = sshll.u32 %s204, 4
    %s214 = int_to_ptr.hbm [resolvable:$true] %s213
    %s215 = sshll.u32 %s205, 4
    %s216 = int_to_ptr.vmem [resolvable:$true] %s215
    %218 = dma.hbm_to_vmem [thread:$0]  %s214, 16, %s216, [#allocation2]
    %s219 = sadd.s32 %s16, 12
    %s220 = sld [smem:[#allocation4 + %s219]]
    %s221 = scalar_lea.hbm %s1, %s220
    %s222 = scalar_lea.vmem [#allocation5], 12
    // Predicated region
    $region50: #{tpu_custom_call.1} parent=1 // pred_check
      _
    $region51: #{tpu_custom_call.1} parent=1 // pred_check_branch
      %224 = sbr.rel target = $region53
    $region52: #{tpu_custom_call.1} parent=1 // pred_region
      %225 = sst [smem:[#allocation9]] [#allocation34]
      %226 = sst [smem:[#allocation10]] [#allocation33]
    $region53: #{tpu_custom_call.1} parent=1 // pred_fallthru
      _
    %228 = shalt.err (0)
    %s230 = sshll.u32 %s221, 4
    %s231 = int_to_ptr.hbm [resolvable:$true] %s230
    %s232 = sshll.u32 %s222, 4
    %s233 = int_to_ptr.vmem [resolvable:$true] %s232
    %235 = dma.hbm_to_vmem [thread:$0]  %s231, 16, %s233, [#allocation2]
    %s236 = sadd.s32 %s16, 13
    %s237 = sld [smem:[#allocation4 + %s236]]
    %s238 = scalar_lea.hbm %s1, %s237
    %s239 = scalar_lea.vmem [#allocation5], 13
    // Predicated region
    $region54: #{tpu_custom_call.1} parent=1 // pred_check
      _
    $region55: #{tpu_custom_call.1} parent=1 // pred_check_branch
      %241 = sbr.rel target = $region57
    $region56: #{tpu_custom_call.1} parent=1 // pred_region
      %242 = sst [smem:[#allocation9]] [#allocation36]
      %243 = sst [smem:[#allocation10]] [#allocation35]
    $region57: #{tpu_custom_call.1} parent=1 // pred_fallthru
      _
    %245 = shalt.err (0)
    %s247 = sshll.u32 %s238, 4
    %s248 = int_to_ptr.hbm [resolvable:$true] %s247
    %s249 = sshll.u32 %s239, 4
    %s250 = int_to_ptr.vmem [resolvable:$true] %s249
    %252 = dma.hbm_to_vmem [thread:$0]  %s248, 16, %s250, [#allocation2]
    %s253 = sadd.s32 %s16, 14
    %s254 = sld [smem:[#allocation4 + %s253]]
    %s255 = scalar_lea.hbm %s1, %s254
    %s256 = scalar_lea.vmem [#allocation5], 14
    // Predicated region
    $region58: #{tpu_custom_call.1} parent=1 // pred_check
      _
    $region59: #{tpu_custom_call.1} parent=1 // pred_check_branch
      %258 = sbr.rel target = $region61
    $region60: #{tpu_custom_call.1} parent=1 // pred_region
      %259 = sst [smem:[#allocation9]] [#allocation38]
      %260 = sst [smem:[#allocation10]] [#allocation37]
    $region61: #{tpu_custom_call.1} parent=1 // pred_fallthru
      _
    %262 = shalt.err (0)
    %s264 = sshll.u32 %s255, 4
    %s265 = int_to_ptr.hbm [resolvable:$true] %s264
    %s266 = sshll.u32 %s256, 4
    %s267 = int_to_ptr.vmem [resolvable:$true] %s266
    %269 = dma.hbm_to_vmem [thread:$0]  %s265, 16, %s267, [#allocation2]
    %s270 = sadd.s32 %s16, 15
    %s271 = sld [smem:[#allocation4 + %s270]]
    %s272 = scalar_lea.hbm %s1, %s271
    %s273 = scalar_lea.vmem [#allocation5], 15
    // Predicated region
    $region62: #{tpu_custom_call.1} parent=1 // pred_check
      _
    $region63: #{tpu_custom_call.1} parent=1 // pred_check_branch
      %275 = sbr.rel target = $region65
    $region64: #{tpu_custom_call.1} parent=1 // pred_region
      %276 = sst [smem:[#allocation9]] [#allocation40]
      %277 = sst [smem:[#allocation10]] [#allocation39]
    $region65: #{tpu_custom_call.1} parent=1 // pred_fallthru
      _
    %279 = shalt.err (0)
    %s281 = sshll.u32 %s272, 4
    %s282 = int_to_ptr.hbm [resolvable:$true] %s281
    %s283 = sshll.u32 %s273, 4
    %s284 = int_to_ptr.vmem [resolvable:$true] %s283
    %286 = dma.hbm_to_vmem [thread:$0]  %s282, 16, %s284, [#allocation2]
    %s287 = smul.u32 1, 1
    %s288 = sshll.u32 %s287, 4
    %289 = dma.done [#allocation2], %s288
    %s290 = sshll.u32 %s287, 4
    %291 = dma.done [#allocation2], %s290
    %s292 = sshll.u32 %s287, 4
    %293 = dma.done [#allocation2], %s292
    %s294 = sshll.u32 %s287, 4
    %295 = dma.done [#allocation2], %s294
    %s296 = sshll.u32 %s287, 4
    %297 = dma.done [#allocation2], %s296
    %s298 = sshll.u32 %s287, 4
    %299 = dma.done [#allocation2], %s298
    %s300 = sshll.u32 %s287, 4
    %301 = dma.done [#allocation2], %s300
    %s302 = sshll.u32 %s287, 4
    %303 = dma.done [#allocation2], %s302
    %s304 = sshll.u32 %s287, 4
    %305 = dma.done [#allocation2], %s304
    %s306 = sshll.u32 %s287, 4
    %307 = dma.done [#allocation2], %s306
    %s308 = sshll.u32 %s287, 4
    %309 = dma.done [#allocation2], %s308
    %s310 = sshll.u32 %s287, 4
    %311 = dma.done [#allocation2], %s310
    %s312 = sshll.u32 %s287, 4
    %313 = dma.done [#allocation2], %s312
    %s314 = sshll.u32 %s287, 4
    %315 = dma.done [#allocation2], %s314
    %s316 = sshll.u32 %s287, 4
    %317 = dma.done [#allocation2], %s316
    %s318 = sshll.u32 %s287, 4
    %319 = dma.done [#allocation2], %s318
    // Predicated region
    $region66: #{tpu_custom_call.1} parent=1 // pred_check
      _
    $region67: #{tpu_custom_call.1} parent=1 // pred_check_branch
      %321 = sbr.rel (0) target = $region69
    $region68: #{tpu_custom_call.1} parent=1 // pred_region
      %323 = vsyncadd [#allocation6], 0
      %s324 = sshll.u32 [#allocation5], 4
      %s325 = int_to_ptr.vmem [resolvable:$true] %s324
      %s326 = sshll.u32 %s2, 4
      %s327 = int_to_ptr.hbm [resolvable:$true] %s326
      %332 = dma.vmem_to_hbm [thread:$0]  %s325, 256, %s327, [#allocation6], 128, 128, 8
    $region69: #{tpu_custom_call.1} parent=1 // pred_fallthru
      _
    // Predicated region
    $region70: #{tpu_custom_call.1} parent=1 // pred_check
      _
    $region71: #{tpu_custom_call.1} parent=1 // pred_check_branch
      %334 = sbr.rel (0) target = $region73
    $region72: #{tpu_custom_call.1} parent=1 // pred_region
      %336 = dma.done [#allocation6], 256
    $region73: #{tpu_custom_call.1} parent=1 // pred_fallthru
      _
    %337 = vsyncpa [#allocation6], 1
  %338 = vsyncmov [#allocation2]
  %s339 = vpop.sfrf %338
  %p340 = scmp.eq.s32.totalorder %s339, 0
  %p341 = pneg %p340
  %343 = shalt.err (%p341)

</llo_original>
